<compile_context>
chip_gen: v7x
topology: tpu7x:2x2x1
jax: 0.10.0
libtpu: 0.0.40
codegen_flags: <defaults>
</compile_context>

<pallas_src>
import jax
import jax.numpy as jnp
from jax.experimental import pallas as pl
from jax.experimental.pallas import tpu as pltpu


def _round_up(x, m):
    return (x + m - 1) // m * m


def bow_embed_kernel(idx_ref, slabs_ref, out_ref):
    # idx_ref:   (tb, 3, tn)  int32 raw symbol ids (-1 in padded pixel columns)
    # slabs_ref: (3, D, Mv)   per-channel transposed embedding slabs
    # out_ref:   (tb, D, tn)  channel-major output tile
    tb, n_ch, tn = idx_ref.shape
    _, d, mv = slabs_ref.shape
    mat_dtype = slabs_ref.dtype

    idx = idx_ref[...]                                            # (tb, 3, tn)
    slabs = slabs_ref[...]                                        # (3, D, Mv)
    iota_m = jax.lax.broadcasted_iota(jnp.int32, (mv, tn), 0)     # (Mv, tn)

    for b in range(tb):                      # unrolled; tb is small (<= 32)
        acc = jnp.zeros((d, tn), jnp.float32)
        for c in range(n_ch):
            # Channel c only uses vocab slab c: small per-slab iota compare
            # (no '+ c*max_value' shift, no full-(V, tn) one-hot), then a slab
            # matmul (D, Mv) @ (Mv, tn) accumulated into the output tile.
            onehot = (idx[b, c:c + 1, :] == iota_m).astype(mat_dtype)  # (Mv, tn)
            acc = acc + jnp.dot(slabs[c], onehot,
                                preferred_element_type=jnp.float32)
        out_ref[b] = acc.astype(out_ref.dtype)


def _pick_pixel_tile(n, cap):
    """Largest lane-dense (multiple-of-128) divisor of n that is <= cap."""
    best = 128
    for j in range(1, n // 128 + 1):
        tn = 128 * j
        if n % tn == 0 and tn <= cap:
            best = tn
    return best


def _pick_batch_tile(batch, n_tiles, bytes_per_tile, target_bytes, cap=32):
    """Largest divisor of `batch` keeping >=2 grid steps (when possible) and
    at most `target_bytes` of output per grid step."""
    best = 1
    for tb in range(1, min(batch, cap) + 1):
        if batch % tb:
            continue
        steps = (batch // tb) * n_tiles
        if steps < 2 and batch * n_tiles >= 2:
            continue            # keep both v7x TensorCores busy
        if tb * bytes_per_tile <= target_bytes:
            best = tb
    return best


def image_bow_embedding(x, table, max_value, *, pixel_tile_cap=4096,
                        step_out_bytes=2 << 20, use_bf16=False):
    """x: (B, 3, H, W) float (integer-valued), table: (3*max_value, D).

    Returns (B, D, H, W) float32, matching the PyTorch module output.
    """
    B, C, H, W = x.shape
    assert C == 3, "ImageBOWEmbedding expects 3 input channels"
    V, D = table.shape
    assert V == 3 * max_value
    HW = H * W

    # ---- wrapper-side layout prep (cheap, one-time) -------------------------
    # Pad the pixel axis to a multiple of 128 so output stores are lane-dense
    # regardless of image size (e.g. babyai 7x7 -> 49 -> 128).  Padded columns
    # use sentinel -1, which never matches the one-hot -> exact zeros, sliced off.
    N = _round_up(HW, 128)
    idx = x.astype(jnp.int32).reshape(B, 3, HW)
    if N != HW:
        idx = jnp.pad(idx, ((0, 0), (0, 0), (0, N - HW)), constant_values=-1)

    # Per-channel transposed table slabs (3, D, Mv_pad).  Padded vocab rows are
    # zero and never matched by in-range ids.
    # TODO(synk): out-of-range ids contribute zero here instead of gathering
    # garbage like torch's nn.Embedding would -- benign semantic difference.
    mv_pad = _round_up(max_value, 8)
    slabs = table.reshape(3, max_value, D)
    if mv_pad != max_value:
        slabs = jnp.pad(slabs, ((0, 0), (0, mv_pad - max_value), (0, 0)))
    slabs = jnp.transpose(slabs, (0, 2, 1))                      # (3, D, Mv_pad)
    if use_bf16:
        # Opt-in (v6e/v7x): bf16 table + one-hot for the native MXU path; the
        # counts are exact 0/1 in bf16, only the table rounds.  Off by default
        # so numerics match the f32 reference exactly.
        slabs = slabs.astype(jnp.bfloat16)

    # ---- tile selection ------------------------------------------------------
    tn = _pick_pixel_tile(N, pixel_tile_cap)
    n_tiles = N // tn
    tb = _pick_batch_tile(B, n_tiles, tn * D * 4, step_out_bytes)
    grid = (B // tb, n_tiles)

    out = pl.pallas_call(
        bow_embed_kernel,
        out_shape=jax.ShapeDtypeStruct((B, D, N), jnp.float32),
        grid_spec=pltpu.PrefetchScalarGridSpec(
            num_scalar_prefetch=0,
            grid=grid,
            in_specs=[
                # indices tile for (batch tile bi, pixel tile ni)
                pl.BlockSpec((tb, 3, tn), lambda bi, ni: (bi, 0, ni)),
                # full slab table, resident (constant index_map) across steps
                pl.BlockSpec((3, D, mv_pad), lambda bi, ni: (0, 0, 0)),
            ],
            out_specs=pl.BlockSpec((tb, D, tn), lambda bi, ni: (bi, 0, ni)),
        ),
        compiler_params=pltpu.CompilerParams(
            dimension_semantics=("parallel", "parallel")),
    )(idx, slabs)

    if N != HW:
        out = out[:, :, :HW]
    # (B, D, H*W) -> (B, D, H, W): free reshape, no transpose needed.
    return out.reshape(B, D, H, W)


def reference(x, table, max_value):
    offsets = jnp.array([0.0, float(max_value), 2.0 * max_value], x.dtype)
    idx = (x + offsets[None, :, None, None]).astype(jnp.int32)   # (B,3,H,W)
    emb = jnp.take(table, idx, axis=0)                           # (B,3,H,W,D)
    return jnp.transpose(jnp.sum(emb, axis=1), (0, 3, 1, 2))     # (B,D,H,W)


if __name__ == "__main__":
    max_value = 16
    embedding_dim = 128
    B, H, W = 2, 16, 16

    key = jax.random.PRNGKey(0)
    k_idx, k_emb = jax.random.split(key)

    # Integer-valued "image" of symbol ids in [0, max_value), as floats (like torch).
    x = jax.random.randint(k_idx, (B, 3, H, W), 0, max_value).astype(jnp.float32)

    # nn.Embedding(3*max_value, embedding_dim) default init: N(0, 1)
    # (initialize_parameters only touches Linear layers).
    table = jax.random.normal(k_emb, (3 * max_value, embedding_dim), jnp.float32)

    out = image_bow_embedding(x, table, max_value)
    out = jax.block_until_ready(out)

    ref = reference(x, table, max_value)
    assert out.shape == (B, embedding_dim, H, W)
    assert jnp.allclose(out, ref, atol=1e-4, rtol=1e-4)

    print("KERNEL_OK")
</pallas_src>

<mosaic_0001>
module attributes {stable_mosaic.version = 11 : i64} {
  func.func @bow_embed_kernel(%arg0: i32, %arg1: i32, %arg2: memref<1x3x256xi32, #tpu.memory_space<vmem>>, %arg3: memref<3x128x16xf32, #tpu.memory_space<vmem>>, %arg4: memref<1x128x256xf32, #tpu.memory_space<vmem>>) attributes {dimension_semantics = [#tpu.dimension_semantics<parallel>, #tpu.dimension_semantics<parallel>], iteration_bounds = array<i64: 2, 1>, scalar_prefetch = 0 : i64, scratch_operands = 0 : i64, tpu.core_type = #tpu.core_type<tc>, window_params = [{transform_indices = @transform_0, window_bounds = array<i64: 1, 3, 256>}, {pipeline_mode = #tpu.pipeline_mode<synchronous>, transform_indices = @transform_1, window_bounds = array<i64: 3, 128, 16>}, {transform_indices = @transform_2, window_bounds = array<i64: 1, 128, 256>}]} {
    %c0 = arith.constant 0 : index
    %c0_0 = arith.constant 0 : index
    %c0_1 = arith.constant 0 : index
    %0 = vector.load %arg2[%c0, %c0_0, %c0_1] : memref<1x3x256xi32, #tpu.memory_space<vmem>>, vector<1x3x256xi32>
    %c0_2 = arith.constant 0 : index
    %c0_3 = arith.constant 0 : index
    %c0_4 = arith.constant 0 : index
    %1 = vector.load %arg3[%c0_2, %c0_3, %c0_4] : memref<3x128x16xf32, #tpu.memory_space<vmem>>, vector<3x128x16xf32>
    %2 = tpu.iota {dimensions = array<i32: 0>} : vector<16x256xi32>
    %cst = arith.constant 0.000000e+00 : f32
    %3 = vector.broadcast %cst : f32 to vector<128x256xf32>
    %4 = vector.extract_strided_slice %0 {offsets = [0, 0, 0], sizes = [1, 1, 256], strides = [1, 1, 1]} : vector<1x3x256xi32> to vector<1x1x256xi32>
    %5 = vector.shape_cast %4 : vector<1x1x256xi32> to vector<1x256xi32>
    %6 = vector.broadcast %5 : vector<1x256xi32> to vector<16x256xi32>
    %7 = arith.cmpi eq, %6, %2 : vector<16x256xi32>
    %8 = arith.extui %7 : vector<16x256xi1> to vector<16x256xi32>
    %9 = arith.sitofp %8 : vector<16x256xi32> to vector<16x256xf32>
    %10 = vector.extract_strided_slice %1 {offsets = [0, 0, 0], sizes = [1, 128, 16], strides = [1, 1, 1]} : vector<3x128x16xf32> to vector<1x128x16xf32>
    %11 = vector.shape_cast %10 : vector<1x128x16xf32> to vector<128x16xf32>
    %cst_5 = arith.constant dense<0.000000e+00> : vector<128x256xf32>
    %12 = tpu.matmul %11, %9, %cst_5 {dimension_numbers = #tpu.dot_dimension_numbers<[1], [0], [0], [1], [0, 0, 1, 1], [], []>} : vector<128x16xf32>, vector<16x256xf32>, vector<128x256xf32> -> vector<128x256xf32>
    %13 = arith.addf %3, %12 : vector<128x256xf32>
    %14 = vector.extract_strided_slice %0 {offsets = [0, 1, 0], sizes = [1, 1, 256], strides = [1, 1, 1]} : vector<1x3x256xi32> to vector<1x1x256xi32>
    %15 = vector.shape_cast %14 : vector<1x1x256xi32> to vector<1x256xi32>
    %16 = vector.broadcast %15 : vector<1x256xi32> to vector<16x256xi32>
    %17 = arith.cmpi eq, %16, %2 : vector<16x256xi32>
    %18 = arith.extui %17 : vector<16x256xi1> to vector<16x256xi32>
    %19 = arith.sitofp %18 : vector<16x256xi32> to vector<16x256xf32>
    %20 = vector.extract_strided_slice %1 {offsets = [1, 0, 0], sizes = [1, 128, 16], strides = [1, 1, 1]} : vector<3x128x16xf32> to vector<1x128x16xf32>
    %21 = vector.shape_cast %20 : vector<1x128x16xf32> to vector<128x16xf32>
    %cst_6 = arith.constant dense<0.000000e+00> : vector<128x256xf32>
    %22 = tpu.matmul %21, %19, %cst_6 {dimension_numbers = #tpu.dot_dimension_numbers<[1], [0], [0], [1], [0, 0, 1, 1], [], []>} : vector<128x16xf32>, vector<16x256xf32>, vector<128x256xf32> -> vector<128x256xf32>
    %23 = arith.addf %13, %22 : vector<128x256xf32>
    %24 = vector.extract_strided_slice %0 {offsets = [0, 2, 0], sizes = [1, 1, 256], strides = [1, 1, 1]} : vector<1x3x256xi32> to vector<1x1x256xi32>
    %25 = vector.shape_cast %24 : vector<1x1x256xi32> to vector<1x256xi32>
    %26 = vector.broadcast %25 : vector<1x256xi32> to vector<16x256xi32>
    %27 = arith.cmpi eq, %26, %2 : vector<16x256xi32>
    %28 = arith.extui %27 : vector<16x256xi1> to vector<16x256xi32>
    %29 = arith.sitofp %28 : vector<16x256xi32> to vector<16x256xf32>
    %30 = vector.extract_strided_slice %1 {offsets = [2, 0, 0], sizes = [1, 128, 16], strides = [1, 1, 1]} : vector<3x128x16xf32> to vector<1x128x16xf32>
    %31 = vector.shape_cast %30 : vector<1x128x16xf32> to vector<128x16xf32>
    %cst_7 = arith.constant dense<0.000000e+00> : vector<128x256xf32>
    %32 = tpu.matmul %31, %29, %cst_7 {dimension_numbers = #tpu.dot_dimension_numbers<[1], [0], [0], [1], [0, 0, 1, 1], [], []>} : vector<128x16xf32>, vector<16x256xf32>, vector<128x256xf32> -> vector<128x256xf32>
    %33 = arith.addf %23, %32 : vector<128x256xf32>
    %c0_8 = arith.constant 0 : index
    %c0_9 = arith.constant 0 : index
    %c0_10 = arith.constant 0 : index
    %34 = vector.load %arg4[%c0_8, %c0_9, %c0_10] : memref<1x128x256xf32, #tpu.memory_space<vmem>>, vector<1x128x256xf32>
    %35 = vector.shape_cast %34 : vector<1x128x256xf32> to vector<128x256xf32>
    %36 = vector.shape_cast %33 : vector<128x256xf32> to vector<1x128x256xf32>
    tpu.vector_store %arg4[%c0_8, %c0_9, %c0_10], %36 {strides = array<i32>} : memref<1x128x256xf32, #tpu.memory_space<vmem>>, vector<1x128x256xf32>,
    return
  }
  func.func @transform_0(%arg0: i32, %arg1: i32) -> (i32, i32, i32) {
    %c0_i32 = arith.constant 0 : i32
    %c0_i32_0 = arith.constant 0 : i32
    return %arg0, %c0_i32, %arg1 : i32, i32, i32
  }
  func.func @transform_1(%arg0: i32, %arg1: i32) -> (i32, i32, i32) {
    %c0_i32 = arith.constant 0 : i32
    %c0_i32_0 = arith.constant 0 : i32
    %c0_i32_1 = arith.constant 0 : i32
    %c0_i32_2 = arith.constant 0 : i32
    return %c0_i32, %c0_i32_0, %c0_i32_1 : i32, i32, i32
  }
  func.func @transform_2(%arg0: i32, %arg1: i32) -> (i32, i32, i32) {
    %c0_i32 = arith.constant 0 : i32
    %c0_i32_0 = arith.constant 0 : i32
    return %arg0, %c0_i32, %arg1 : i32, i32, i32
  }
}

</mosaic_0001>

<llo_original>
// kernel: tpu_custom_call.1
$region0: #{tpu_custom_call.1}
  #allocation0 [shape = 'u32[]', space=smem, size = 0x4, offset = 0x4, fixed_abs, tag = 'smem constant byte address 0x4 - core index']
  #allocation1 [shape = 'u32[144,128]{1,0:T(1,128)}', space=vmem, size = 0x12000, scoped, tag = 'internal scratch']
  %s0 = inlined_call_operand.vmem [shape: s32[2,3,256], index: 0, kind: input, shape index: {}]
  %s1 = inlined_call_operand.vmem [shape: f32[3,128,16], index: 1, kind: input, shape index: {}]
  %s2 = inlined_call_operand.hbm [shape: f32[2,128,256], index: 2, kind: output, shape index: {}]
  %s3 = sld [smem:[#allocation0]]
  $region41: #{tpu_custom_call.1} parent=0
    _
  %s5 = ssub.s32 1, %s3
  %s6 = scalar_select 0, %s5, %s3
  $region1: #{tpu_custom_call.1} parent=0
    #allocation2 [shape = 'u8[262144]{0}', space=vmem, size = 0x40000, scoped, tag = 'output window, operand 0']
    #allocation3 [shape = 's32[2]{0}', space=sflag, size = 0x8, scoped, tag = 'scoped memory for tpu_custom_call.1']
    %7 = vsyncpa [#allocation3], 0
    %s8 = scalar_lea.sflag [#allocation3], 1
    %9 = vsyncpa %s8, 0
    loop: start=0, step=1, limit=4
    $region2: #{tpu_custom_call.1} parent=1 // loop_pre_header
      _
    $region3: #{tpu_custom_call.1} parent=1 // loop_header
      %s11 = sphi 0, %s15
      %p12 = scmp.ge.s32.totalorder %s11, 4
      %s18 = sphi 0, %s30
      %s19 = sphi 0, %s26
      %s20 = sphi 0, %s18
      %s21 = sphi 0, %s19
      %s22 = sphi 0, %s20
      %s23 = sphi 0, %s21
      %s35 = sphi 0, %s37
      %s38 = sphi 0, %s35
      %s39 = sphi 0, %s38
      %s55 = sphi 0, %s39
      %s59 = sphi 0, %s59
      %s61 = sphi 0, %s59
      %s62 = sphi 0, %s61
      %s76 = sphi 0, %s62
      %s84 = sphi 0, %s86
      %s87 = sphi 0, %s84
      %s88 = sphi 0, %s87
      %s104 = sphi 0, %s88
    $region4: #{tpu_custom_call.1} parent=1 // loop_header_branch
      %14 = sbr.rel (%p12) target = $region8
    $region5: #{tpu_custom_call.1} parent=1 // loop_body
      %s16 = ssub.s32 %s11, 1
      %s17 = ssub.s32 %s11, 2
      %s24 = sadd.s32 1, %s19
      %p25 = scmp.ge.s32.totalorder %s24, 1
      %s26 = scalar_select %p25, 0, %s24
      %s27 = sadd.s32 1, %s18
      %s28 = scalar_select %p25, %s27, %s18
      %p29 = scmp.ge.s32.totalorder %s28, 2
      %s30 = scalar_select %p29, 0, %s28
      %s31 = ssub.s32 %s18, %s30
      %s32 = ssub.s32 %s19, %s26
      %s33 = sor.u32 %s31, %s32
      %p34 = scmp.eq.s32.totalorder %s33, 0
      %s36 = sadd.s32 %s35, 1
      %s37 = scalar_select %p34, %s35, %s36
      %p40 = pneg %p34
      %p41 = scmp.eq.s32.totalorder %s11, 1
      %p42 = por %p40, %p41
      %p43 = scmp.ne.s32.totalorder %s35, %s38
      %p44 = scmp.eq.s32.totalorder %s11, 0
      %p45 = por %p43, %p44
      %p46 = scmp.ne.s32.totalorder %s35, %s38
      %p47 = scmp.eq.s32.totalorder %s16, 1
      %p48 = por %p46, %p47
      %p49 = scmp.ne.s32.totalorder %s38, %s39
      %p50 = scmp.eq.s32.totalorder %s16, 0
      %p51 = por %p49, %p50
      %p52 = scmp.ne.s32.totalorder %s38, %s39
      %p53 = scmp.eq.s32.totalorder %s17, 1
      %p54 = por %p52, %p53
      %p56 = scmp.ne.s32.totalorder %s39, %s55
      %p57 = scmp.eq.s32.totalorder %s17, 0
      %p58 = por %p56, %p57
      %s60 = sadd.s32 %s59, 1
      %p63 = scmp.eq.s32.totalorder %s11, 1
      %p64 = scmp.ne.s32.totalorder %s59, %s61
      %p65 = scmp.eq.s32.totalorder %s11, 0
      %p66 = por %p64, %p65
      %p67 = scmp.ne.s32.totalorder %s59, %s61
      %p68 = scmp.eq.s32.totalorder %s16, 1
      %p69 = por %p67, %p68
      %p70 = scmp.ne.s32.totalorder %s61, %s62
      %p71 = scmp.eq.s32.totalorder %s16, 0
      %p72 = por %p70, %p71
      %p73 = scmp.ne.s32.totalorder %s61, %s62
      %p74 = scmp.eq.s32.totalorder %s17, 1
      %p75 = por %p73, %p74
      %p77 = scmp.ne.s32.totalorder %s62, %s76
      %p78 = scmp.eq.s32.totalorder %s17, 0
      %p79 = por %p77, %p78
      %s80 = ssub.s32 %s18, %s30
      %s81 = ssub.s32 %s19, %s26
      %s82 = sor.u32 %s80, %s81
      %p83 = scmp.eq.s32.totalorder %s82, 0
      %s85 = sadd.s32 %s84, 1
      %s86 = scalar_select %p83, %s84, %s85
      %p89 = pneg %p83
      %p90 = scmp.eq.s32.totalorder %s11, 1
      %p91 = por %p89, %p90
      %p92 = scmp.ne.s32.totalorder %s84, %s87
      %p93 = scmp.eq.s32.totalorder %s11, 0
      %p94 = por %p92, %p93
      %p95 = scmp.ne.s32.totalorder %s84, %s87
      %p96 = scmp.eq.s32.totalorder %s16, 1
      %p97 = por %p95, %p96
      %p98 = scmp.ne.s32.totalorder %s87, %s88
      %p99 = scmp.eq.s32.totalorder %s16, 0
      %p100 = por %p98, %p99
      %p101 = scmp.ne.s32.totalorder %s87, %s88
      %p102 = scmp.eq.s32.totalorder %s17, 1
      %p103 = por %p101, %p102
      %p105 = scmp.ne.s32.totalorder %s88, %s104
      %p106 = scmp.eq.s32.totalorder %s17, 0
      %p107 = por %p105, %p106
      %p108 = scmp.le.s32.totalorder 1, %s11
      %p109 = scmp.lt.s32.totalorder %s11, 3
      %p110 = pnand %p108, %p109
      %p111 = pneg %p110
      // Predicated region
      $region9: #{tpu_custom_call.1} parent=5 // pred_check
        _
      $region10: #{tpu_custom_call.1} parent=5 // pred_check_branch
        %113 = sbr.rel (%p110) target = $region12
      $region11: #{tpu_custom_call.1} parent=5 // pred_region
        %s114 = ssub.s32 %s11, 1
        // Predicated region
        $region13: #{tpu_custom_call.1} parent=11 // pred_check
          %p115 = pneg %p72
        $region14: #{tpu_custom_call.1} parent=11 // pred_check_branch
          %117 = sbr.rel (%p115) target = $region16
        $region15: #{tpu_custom_call.1} parent=11 // pred_region
          _
        $region16: #{tpu_custom_call.1} parent=11 // pred_fallthru
          _
      $region12: #{tpu_custom_call.1} parent=5 // pred_fallthru
        _
      %p118 = scmp.lt.s32.totalorder %s11, 2
      // Predicated region
      $region17: #{tpu_custom_call.1} parent=5 // pred_check
        %p119 = pneg %p118
      $region18: #{tpu_custom_call.1} parent=5 // pred_check_branch
        %121 = sbr.rel (%p119) target = $region20
      $region19: #{tpu_custom_call.1} parent=5 // pred_region
        // Predicated region
        $region21: #{tpu_custom_call.1} parent=19 // pred_check
          %p122 = pneg %p45
        $region22: #{tpu_custom_call.1} parent=19 // pred_check_branch
          %124 = sbr.rel (%p122) target = $region24
        $region23: #{tpu_custom_call.1} parent=19 // pred_region
          %s125 = smul.u32 2, %s19
          %p126 = scmp.lt.s32.totalorder %s18, 1
          %s127 = scalar_select %p126, %s18, 1
          %p128 = scmp.lt.s32.totalorder %s125, 1
          %s129 = scalar_select %p128, %s125, 1
          %s130 = smul.addr %s127, 2
          %s131 = sadd.s32 %s129, %s130
          %s132 = smul.addr %s131, 4
          %s133 = scalar_lea.vmem %s0, %s132
          %s134 = smul.u32 2, %s19
        $region24: #{tpu_custom_call.1} parent=19 // pred_fallthru
          _
      $region20: #{tpu_custom_call.1} parent=5 // pred_fallthru
        _
      %p135 = scmp.le.s32.totalorder 1, %s11
      %p136 = scmp.lt.s32.totalorder %s11, 3
      %p137 = pnand %p135, %p136
      %p138 = pneg %p137
      // Predicated region
      $region25: #{tpu_custom_call.1} parent=5 // pred_check
        _
      $region26: #{tpu_custom_call.1} parent=5 // pred_check_branch
        %140 = sbr.rel (%p137) target = $region28
      $region27: #{tpu_custom_call.1} parent=5 // pred_region
        %s141 = ssub.s32 %s11, 1
        %s142 = smul.u32 2, %s21
        %p143 = scmp.lt.s32.totalorder %s20, 1
        %s144 = scalar_select %p143, %s20, 1
        %p145 = scmp.lt.s32.totalorder %s142, 1
        %s146 = scalar_select %p145, %s142, 1
        %s147 = smul.addr %s144, 2
        %s148 = sadd.s32 %s146, %s147
        %s149 = smul.addr %s148, 4
        %s150 = scalar_lea.vmem %s0, %s149
        %p151 = pneg %p51
        %p152 = pneg %p48
        %p153 = pneg %p72
        %p154 = pneg %p69
        %p155 = pneg %p100
        %p156 = pneg %p97
        %s157 = sand.u32 %s87, 1
        %s158 = scalar_lea.sflag [#allocation3], %s157
        %s159 = sand.u32 %s87, 1
        %s160 = smul.addr %s159, 256
        %s161 = scalar_lea.vmem [#allocation2], %s160
        %s162 = smul.u32 2, %s21
        %p163 = scmp.lt.s32.totalorder %s20, 1
        %s164 = scalar_select %p163, %s20, 1
        %p165 = scmp.lt.s32.totalorder %s162, 1
        %s166 = scalar_select %p165, %s162, 1
        %s167 = smul.addr %s164, 2
        %s168 = sadd.s32 %s166, %s167
        %s169 = smul.addr %s168, 4
        %s170 = scalar_lea.vmem %s0, %s169
        %s171 = smul.u32 2, %s21
        %s172 = smul.u32 2, %s21
        %v173 = vld [vmem:[%s170] sm:$0x77]
        %v174 = vld [vmem:[%s1] sm:$0xff]
        %v175 = vld [vmem:[%s1 + $0x8] sm:$0xff]
        %v176 = vld [vmem:[%s1 + $0x10] sm:$0xff]
        %v177 = vld [vmem:[%s1 + $0x18] sm:$0xff]
        %v178 = vld [vmem:[%s1 + $0x20] sm:$0xff]
        %v179 = vld [vmem:[%s1 + $0x28] sm:$0xff]
        %v180 = vld [vmem:[%s1 + $0x30] sm:$0xff]
        %v181 = vld [vmem:[%s1 + $0x38] sm:$0xff]
        %v182 = vld [vmem:[%s1 + $0x40] sm:$0xff]
        %v183 = vld [vmem:[%s1 + $0x48] sm:$0xff]
        %v184 = vld [vmem:[%s1 + $0x50] sm:$0xff]
        %v185 = vld [vmem:[%s1 + $0x58] sm:$0xff]
        %v186 = vld [vmem:[%s1 + $0x60] sm:$0xff]
        %v187 = vld [vmem:[%s1 + $0x68] sm:$0xff]
        %v188 = vld [vmem:[%s1 + $0x70] sm:$0xff]
        %v189 = vld [vmem:[%s1 + $0x78] sm:$0xff]
        %v190 = vld [vmem:[%s1 + $0x80] sm:$0xff]
        %v191 = vld [vmem:[%s1 + $0x88] sm:$0xff]
        %v192 = vld [vmem:[%s1 + $0x90] sm:$0xff]
        %v193 = vld [vmem:[%s1 + $0x98] sm:$0xff]
        %v194 = vld [vmem:[%s1 + $0xa0] sm:$0xff]
        %v195 = vld [vmem:[%s1 + $0xa8] sm:$0xff]
        %v196 = vld [vmem:[%s1 + $0xb0] sm:$0xff]
        %v197 = vld [vmem:[%s1 + $0xb8] sm:$0xff]
        %v198 = vld [vmem:[%s1 + $0xc0] sm:$0xff]
        %v199 = vld [vmem:[%s1 + $0xc8] sm:$0xff]
        %v200 = vld [vmem:[%s1 + $0xd0] sm:$0xff]
        %v201 = vld [vmem:[%s1 + $0xd8] sm:$0xff]
        %v202 = vld [vmem:[%s1 + $0xe0] sm:$0xff]
        %v203 = vld [vmem:[%s1 + $0xe8] sm:$0xff]
        %v204 = vld [vmem:[%s1 + $0xf0] sm:$0xff]
        %v205 = vld [vmem:[%s1 + $0xf8] sm:$0xff]
        %v206 = vld [vmem:[%s1 + $0x100] sm:$0xff]
        %v207 = vld [vmem:[%s1 + $0x108] sm:$0xff]
        %v208 = vld [vmem:[%s1 + $0x110] sm:$0xff]
        %v209 = vld [vmem:[%s1 + $0x118] sm:$0xff]
        %v210 = vld [vmem:[%s1 + $0x120] sm:$0xff]
        %v211 = vld [vmem:[%s1 + $0x128] sm:$0xff]
        %v212 = vld [vmem:[%s1 + $0x130] sm:$0xff]
        %v213 = vld [vmem:[%s1 + $0x138] sm:$0xff]
        %v214 = vld [vmem:[%s1 + $0x140] sm:$0xff]
        %v215 = vld [vmem:[%s1 + $0x148] sm:$0xff]
        %v216 = vld [vmem:[%s1 + $0x150] sm:$0xff]
        %v217 = vld [vmem:[%s1 + $0x158] sm:$0xff]
        %v218 = vld [vmem:[%s1 + $0x160] sm:$0xff]
        %v219 = vld [vmem:[%s1 + $0x168] sm:$0xff]
        %v220 = vld [vmem:[%s1 + $0x170] sm:$0xff]
        %v221 = vld [vmem:[%s1 + $0x178] sm:$0xff]
        %v222 = vlaneseq
        %v223 = vshrl.u32 %v222, 7
        %v224 = vadd.s32 %v223, 8
        %v225 = vlaneseq
        %v226 = vshrl.u32 %v225, 7
        %v227 = vsub.s32 0, %v226
        %v228 = vrot.slane %v173, %v227
        %v229 = vlaneseq
        %v230 = vshrl.u32 %v229, 7
        %v231 = vsub.s32 4, %v230
        %v232 = vrot.slane %v173, %v231
        %v233 = vlaneseq
        %v234 = vshrl.u32 %v233, 7
        %v235 = vsub.s32 0, %v234
        %v236 = vrot.slane %v228, %v235
        %v237 = vlaneseq
        %v238 = vshrl.u32 %v237, 7
        %v239 = vsub.s32 0, %v238
        %v240 = vrot.slane %v232, %v239
        %vm241 = vcmp.eq.s32.totalorder %v236, %v223
        %vm242 = vcmp.eq.s32.totalorder %v240, %v223
        %vm243 = vcmp.eq.s32.totalorder %v236, %v224
        %vm244 = vcmp.eq.s32.totalorder %v240, %v224
        %v245 = vsel %vm241, 1, 0
        %v246 = vsel %vm242, 1, 0
        %v247 = vsel %vm243, 1, 0
        %v248 = vsel %vm244, 1, 0
        %v249 = vcvt.s32.f32 %v245
        %v250 = vcvt.s32.f32 %v246
        %v251 = vcvt.s32.f32 %v247
        %v252 = vcvt.s32.f32 %v248
        %v253 = vlaneseq
        %v254 = vshrl.u32 %v253, 7
        %v255 = vsub.s32 1, %v254
        %v256 = vrot.slane %v173, %v255
        %v257 = vlaneseq
        %v258 = vshrl.u32 %v257, 7
        %v259 = vsub.s32 5, %v258
        %v260 = vrot.slane %v173, %v259
        %v261 = vlaneseq
        %v262 = vshrl.u32 %v261, 7
        %v263 = vsub.s32 1, %v262
        %v264 = vrot.slane %v256, %v263
        %v265 = vlaneseq
        %v266 = vshrl.u32 %v265, 7
        %v267 = vsub.s32 1, %v266
        %v268 = vrot.slane %v260, %v267
        %vm269 = vcmp.eq.s32.totalorder %v264, %v223
        %vm270 = vcmp.eq.s32.totalorder %v268, %v223
        %vm271 = vcmp.eq.s32.totalorder %v264, %v224
        %vm272 = vcmp.eq.s32.totalorder %v268, %v224
        %v273 = vsel %vm269, 1, 0
        %v274 = vsel %vm270, 1, 0
        %v275 = vsel %vm271, 1, 0
        %v276 = vsel %vm272, 1, 0
        %v277 = vcvt.s32.f32 %v273
        %v278 = vcvt.s32.f32 %v274
        %v279 = vcvt.s32.f32 %v275
        %v280 = vcvt.s32.f32 %v276
        %vm281 = vcmask 130048
        %v283 = vsel %vm281, %v190, 0
        %v286 = vsel %vm281, %v191, 0
        %v289 = vsel %vm281, %v192, 0
        %v292 = vsel %vm281, %v193, 0
        %v295 = vsel %vm281, %v194, 0
        %v298 = vsel %vm281, %v195, 0
        %v301 = vsel %vm281, %v196, 0
        %v304 = vsel %vm281, %v197, 0
        %v307 = vsel %vm281, %v198, 0
        %v310 = vsel %vm281, %v199, 0
        %v313 = vsel %vm281, %v200, 0
        %v316 = vsel %vm281, %v201, 0
        %v319 = vsel %vm281, %v202, 0
        %v322 = vsel %vm281, %v203, 0
        %v325 = vsel %vm281, %v204, 0
        %v328 = vsel %vm281, %v205, 0
        %330 = vmatprep.subr.mxu0 %v278
        %331 = vmatpush1.msra.mxu0 %v277
        %332 = vmatprep.subr.mxu0 %v280
        %333 = vmatpush1.msra.mxu0 %v279
        %334 = vmatprep.subr.mxu0 0.0
        %335 = vmatpush1.msra.mxu0 0.0
        %336 = vmatprep.subr.mxu0 0.0
        %337 = vmatpush1.msra.mxu0 0.0
        %338 = vmatprep.subr.mxu0 0.0
        %339 = vmatpush1.msra.mxu0 0.0
        %340 = vmatprep.subr.mxu0 0.0
        %341 = vmatpush1.msra.mxu0 0.0
        %342 = vmatprep.subr.mxu0 0.0
        %343 = vmatpush1.msra.mxu0 0.0
        %344 = vmatprep.subr.mxu0 0.0
        %345 = vmatpush1.msra.mxu0 0.0
        %346 = vmatprep.subr.mxu0 0.0
        %347 = vmatpush1.msra.mxu0 0.0
        %348 = vmatprep.subr.mxu0 0.0
        %349 = vmatpush1.msra.mxu0 0.0
        %350 = vmatprep.subr.mxu0 0.0
        %351 = vmatpush1.msra.mxu0 0.0
        %352 = vmatprep.subr.mxu0 0.0
        %353 = vmatpush1.msra.mxu0 0.0
        %354 = vmatprep.subr.mxu0 0.0
        %355 = vmatpush1.msra.mxu0 0.0
        %356 = vmatprep.subr.mxu0 0.0
        %357 = vmatpush1.msra.mxu0 0.0
        %358 = vmatprep.subr.mxu0 0.0
        %359 = vmatpush1.msra.mxu0 0.0
        %360 = vmatprep.subr.mxu0 0.0
        %361 = vmatpush1.msra.mxu0 0.0
        %362 = vmatprep.subr.mxu0 0.0
        %363 = vmatpush1.msra.mxu0 0.0
        %364 = vmatprep.subr.mxu0 0.0
        %365 = vmatpush1.msra.mxu0 0.0
        %366 = vmatprep.subr.mxu0 0.0
        %367 = vmatpush1.msra.mxu0 0.0
        %368 = vmatprep.subr.mxu0 0.0
        %369 = vmatpush1.msra.mxu0 0.0
        %370 = vmatprep.subr.mxu0 0.0
        %371 = vmatpush1.msra.mxu0 0.0
        %372 = vmatprep.subr.mxu0 0.0
        %373 = vmatpush1.msra.mxu0 0.0
        %374 = vmatprep.subr.mxu0 0.0
        %375 = vmatpush1.msra.mxu0 0.0
        %376 = vmatprep.subr.mxu0 0.0
        %377 = vmatpush1.msra.mxu0 0.0
        %378 = vmatprep.subr.mxu0 0.0
        %379 = vmatpush1.msra.mxu0 0.0
        %380 = vmatprep.subr.mxu0 0.0
        %381 = vmatpush1.msra.mxu0 0.0
        %382 = vmatprep.subr.mxu0 0.0
        %383 = vmatpush1.msra.mxu0 0.0
        %384 = vmatprep.subr.mxu0 0.0
        %385 = vmatpush1.msra.mxu0 0.0
        %386 = vmatprep.subr.mxu0 0.0
        %387 = vmatpush1.msra.mxu0 0.0
        %388 = vmatprep.subr.mxu0 0.0
        %389 = vmatpush1.msra.mxu0 0.0
        %390 = vmatprep.subr.mxu0 0.0
        %391 = vmatpush1.msra.mxu0 0.0
        %392 = vmatprep.subr.mxu0 0.0
        %393 = vmatpush1.msra.mxu0 0.0
        %394 = vmatprep.mubr.f32.mxu0 0.0
        %395 = vmatmul.mubr.f32.gmra.mrb[0].mxu0 %v283
        %v396 = vpop.f32.mrb[0].mxu0
        %v397 = vadd.f32 0.0, %v396
        %v398 = vpop.f32.mrb[0].mxu0
        %v399 = vadd.f32 0.0, %v398
        %400 = vmatprep.mubr.f32.mxu0 0.0
        %401 = vmatmul.mubr.f32.gmra.mrb[0].mxu0 %v286
        %v402 = vpop.f32.mrb[0].mxu0
        %v403 = vadd.f32 0.0, %v402
        %v404 = vpop.f32.mrb[0].mxu0
        %v405 = vadd.f32 0.0, %v404
        %406 = vmatprep.mubr.f32.mxu0 0.0
        %407 = vmatmul.mubr.f32.gmra.mrb[0].mxu0 %v289
        %v408 = vpop.f32.mrb[0].mxu0
        %v409 = vadd.f32 0.0, %v408
        %v410 = vpop.f32.mrb[0].mxu0
        %v411 = vadd.f32 0.0, %v410
        %412 = vmatprep.mubr.f32.mxu0 0.0
        %413 = vmatmul.mubr.f32.gmra.mrb[0].mxu0 %v292
        %v414 = vpop.f32.mrb[0].mxu0
        %v415 = vadd.f32 0.0, %v414
        %v416 = vpop.f32.mrb[0].mxu0
        %v417 = vadd.f32 0.0, %v416
        %418 = vmatprep.mubr.f32.mxu0 0.0
        %419 = vmatmul.mubr.f32.gmra.mrb[0].mxu0 %v295
        %v420 = vpop.f32.mrb[0].mxu0
        %v421 = vadd.f32 0.0, %v420
        %v422 = vpop.f32.mrb[0].mxu0
        %v423 = vadd.f32 0.0, %v422
        %424 = vmatprep.mubr.f32.mxu0 0.0
        %425 = vmatmul.mubr.f32.gmra.mrb[0].mxu0 %v298
        %v426 = vpop.f32.mrb[0].mxu0
        %v427 = vadd.f32 0.0, %v426
        %v428 = vpop.f32.mrb[0].mxu0
        %v429 = vadd.f32 0.0, %v428
        %430 = vmatprep.mubr.f32.mxu0 0.0
        %431 = vmatmul.mubr.f32.gmra.mrb[0].mxu0 %v301
        %v432 = vpop.f32.mrb[0].mxu0
        %v433 = vadd.f32 0.0, %v432
        %v434 = vpop.f32.mrb[0].mxu0
        %v435 = vadd.f32 0.0, %v434
        %436 = vmatprep.mubr.f32.mxu0 0.0
        %437 = vmatmul.mubr.f32.gmra.mrb[0].mxu0 %v304
        %v438 = vpop.f32.mrb[0].mxu0
        %v439 = vadd.f32 0.0, %v438
        %v440 = vpop.f32.mrb[0].mxu0
        %v441 = vadd.f32 0.0, %v440
        %442 = vmatprep.mubr.f32.mxu0 0.0
        %443 = vmatmul.mubr.f32.gmra.mrb[0].mxu0 %v307
        %v444 = vpop.f32.mrb[0].mxu0
        %v445 = vadd.f32 0.0, %v444
        %v446 = vpop.f32.mrb[0].mxu0
        %v447 = vadd.f32 0.0, %v446
        %448 = vmatprep.mubr.f32.mxu0 0.0
        %449 = vmatmul.mubr.f32.gmra.mrb[0].mxu0 %v310
        %v450 = vpop.f32.mrb[0].mxu0
        %v451 = vadd.f32 0.0, %v450
        %v452 = vpop.f32.mrb[0].mxu0
        %v453 = vadd.f32 0.0, %v452
        %454 = vmatprep.mubr.f32.mxu0 0.0
        %455 = vmatmul.mubr.f32.gmra.mrb[0].mxu0 %v313
        %v456 = vpop.f32.mrb[0].mxu0
        %v457 = vadd.f32 0.0, %v456
        %v458 = vpop.f32.mrb[0].mxu0
        %v459 = vadd.f32 0.0, %v458
        %460 = vmatprep.mubr.f32.mxu0 0.0
        %461 = vmatmul.mubr.f32.gmra.mrb[0].mxu0 %v316
        %v462 = vpop.f32.mrb[0].mxu0
        %v463 = vadd.f32 0.0, %v462
        %v464 = vpop.f32.mrb[0].mxu0
        %v465 = vadd.f32 0.0, %v464
        %466 = vmatprep.mubr.f32.mxu0 0.0
        %467 = vmatmul.mubr.f32.gmra.mrb[0].mxu0 %v319
        %v468 = vpop.f32.mrb[0].mxu0
        %v469 = vadd.f32 0.0, %v468
        %v470 = vpop.f32.mrb[0].mxu0
        %v471 = vadd.f32 0.0, %v470
        %472 = vmatprep.mubr.f32.mxu0 0.0
        %473 = vmatmul.mubr.f32.gmra.mrb[0].mxu0 %v322
        %v474 = vpop.f32.mrb[0].mxu0
        %v475 = vadd.f32 0.0, %v474
        %v476 = vpop.f32.mrb[0].mxu0
        %v477 = vadd.f32 0.0, %v476
        %478 = vmatprep.mubr.f32.mxu0 0.0
        %479 = vmatmul.mubr.f32.gmra.mrb[0].mxu0 %v325
        %v480 = vpop.f32.mrb[0].mxu0
        %v481 = vadd.f32 0.0, %v480
        %v482 = vpop.f32.mrb[0].mxu0
        %v483 = vadd.f32 0.0, %v482
        %484 = vmatprep.mubr.f32.mxu0 0.0
        %485 = vmatmul.mubr.f32.gmra.mrb[0].mxu0 %v328
        %v486 = vpop.f32.mrb[0].mxu0
        %v487 = vadd.f32 0.0, %v486
        %v488 = vpop.f32.mrb[0].mxu0
        %v489 = vadd.f32 0.0, %v488
        %490 = vdwg.mxu0
        %v492 = vsel %vm281, %v174, 0
        %v495 = vsel %vm281, %v175, 0
        %v498 = vsel %vm281, %v176, 0
        %v501 = vsel %vm281, %v177, 0
        %v504 = vsel %vm281, %v178, 0
        %v507 = vsel %vm281, %v179, 0
        %v510 = vsel %vm281, %v180, 0
        %v513 = vsel %vm281, %v181, 0
        %v516 = vsel %vm281, %v182, 0
        %v519 = vsel %vm281, %v183, 0
        %v522 = vsel %vm281, %v184, 0
        %v525 = vsel %vm281, %v185, 0
        %v528 = vsel %vm281, %v186, 0
        %v531 = vsel %vm281, %v187, 0
        %v534 = vsel %vm281, %v188, 0
        %v537 = vsel %vm281, %v189, 0
        %539 = vmatprep.subr.mxu0 %v250
        %540 = vmatpush1.msra.mxu0 %v249
        %541 = vmatprep.subr.mxu0 %v252
        %542 = vmatpush1.msra.mxu0 %v251
        %543 = vmatprep.subr.mxu0 0.0
        %544 = vmatpush1.msra.mxu0 0.0
        %545 = vmatprep.subr.mxu0 0.0
        %546 = vmatpush1.msra.mxu0 0.0
        %547 = vmatprep.subr.mxu0 0.0
        %548 = vmatpush1.msra.mxu0 0.0
        %549 = vmatprep.subr.mxu0 0.0
        %550 = vmatpush1.msra.mxu0 0.0
        %551 = vmatprep.subr.mxu0 0.0
        %552 = vmatpush1.msra.mxu0 0.0
        %553 = vmatprep.subr.mxu0 0.0
        %554 = vmatpush1.msra.mxu0 0.0
        %555 = vmatprep.subr.mxu0 0.0
        %556 = vmatpush1.msra.mxu0 0.0
        %557 = vmatprep.subr.mxu0 0.0
        %558 = vmatpush1.msra.mxu0 0.0
        %559 = vmatprep.subr.mxu0 0.0
        %560 = vmatpush1.msra.mxu0 0.0
        %561 = vmatprep.subr.mxu0 0.0
        %562 = vmatpush1.msra.mxu0 0.0
        %563 = vmatprep.subr.mxu0 0.0
        %564 = vmatpush1.msra.mxu0 0.0
        %565 = vmatprep.subr.mxu0 0.0
        %566 = vmatpush1.msra.mxu0 0.0
        %567 = vmatprep.subr.mxu0 0.0
        %568 = vmatpush1.msra.mxu0 0.0
        %569 = vmatprep.subr.mxu0 0.0
        %570 = vmatpush1.msra.mxu0 0.0
        %571 = vmatprep.subr.mxu0 0.0
        %572 = vmatpush1.msra.mxu0 0.0
        %573 = vmatprep.subr.mxu0 0.0
        %574 = vmatpush1.msra.mxu0 0.0
        %575 = vmatprep.subr.mxu0 0.0
        %576 = vmatpush1.msra.mxu0 0.0
        %577 = vmatprep.subr.mxu0 0.0
        %578 = vmatpush1.msra.mxu0 0.0
        %579 = vmatprep.subr.mxu0 0.0
        %580 = vmatpush1.msra.mxu0 0.0
        %581 = vmatprep.subr.mxu0 0.0
        %582 = vmatpush1.msra.mxu0 0.0
        %583 = vmatprep.subr.mxu0 0.0
        %584 = vmatpush1.msra.mxu0 0.0
        %585 = vmatprep.subr.mxu0 0.0
        %586 = vmatpush1.msra.mxu0 0.0
        %587 = vmatprep.subr.mxu0 0.0
        %588 = vmatpush1.msra.mxu0 0.0
        %589 = vmatprep.subr.mxu0 0.0
        %590 = vmatpush1.msra.mxu0 0.0
        %591 = vmatprep.subr.mxu0 0.0
        %592 = vmatpush1.msra.mxu0 0.0
        %593 = vmatprep.subr.mxu0 0.0
        %594 = vmatpush1.msra.mxu0 0.0
        %595 = vmatprep.subr.mxu0 0.0
        %596 = vmatpush1.msra.mxu0 0.0
        %597 = vmatprep.subr.mxu0 0.0
        %598 = vmatpush1.msra.mxu0 0.0
        %599 = vmatprep.subr.mxu0 0.0
        %600 = vmatpush1.msra.mxu0 0.0
        %601 = vmatprep.subr.mxu0 0.0
        %602 = vmatpush1.msra.mxu0 0.0
        %603 = vmatprep.mubr.f32.mxu0 0.0
        %604 = vmatmul.mubr.f32.gmra.mrb[0].mxu0 %v492
        %v605 = vpop.f32.mrb[0].mxu0
        %v606 = vadd.f32 %v397, %v605
        %v607 = vpop.f32.mrb[0].mxu0
        %v608 = vadd.f32 %v399, %v607
        %609 = vmatprep.mubr.f32.mxu0 0.0
        %610 = vmatmul.mubr.f32.gmra.mrb[0].mxu0 %v495
        %v611 = vpop.f32.mrb[0].mxu0
        %v612 = vadd.f32 %v403, %v611
        %v613 = vpop.f32.mrb[0].mxu0
        %v614 = vadd.f32 %v405, %v613
        %615 = vmatprep.mubr.f32.mxu0 0.0
        %616 = vmatmul.mubr.f32.gmra.mrb[0].mxu0 %v498
        %v617 = vpop.f32.mrb[0].mxu0
        %v618 = vadd.f32 %v409, %v617
        %v619 = vpop.f32.mrb[0].mxu0
        %v620 = vadd.f32 %v411, %v619
        %621 = vmatprep.mubr.f32.mxu0 0.0
        %622 = vmatmul.mubr.f32.gmra.mrb[0].mxu0 %v501
        %v623 = vpop.f32.mrb[0].mxu0
        %v624 = vadd.f32 %v415, %v623
        %v625 = vpop.f32.mrb[0].mxu0
        %v626 = vadd.f32 %v417, %v625
        %627 = vmatprep.mubr.f32.mxu0 0.0
        %628 = vmatmul.mubr.f32.gmra.mrb[0].mxu0 %v504
        %v629 = vpop.f32.mrb[0].mxu0
        %v630 = vadd.f32 %v421, %v629
        %v631 = vpop.f32.mrb[0].mxu0
        %v632 = vadd.f32 %v423, %v631
        %633 = vmatprep.mubr.f32.mxu0 0.0
        %634 = vmatmul.mubr.f32.gmra.mrb[0].mxu0 %v507
        %v635 = vpop.f32.mrb[0].mxu0
        %v636 = vadd.f32 %v427, %v635
        %v637 = vpop.f32.mrb[0].mxu0
        %v638 = vadd.f32 %v429, %v637
        %639 = vmatprep.mubr.f32.mxu0 0.0
        %640 = vmatmul.mubr.f32.gmra.mrb[0].mxu0 %v510
        %v641 = vpop.f32.mrb[0].mxu0
        %v642 = vadd.f32 %v433, %v641
        %v643 = vpop.f32.mrb[0].mxu0
        %v644 = vadd.f32 %v435, %v643
        %645 = vmatprep.mubr.f32.mxu0 0.0
        %646 = vmatmul.mubr.f32.gmra.mrb[0].mxu0 %v513
        %v647 = vpop.f32.mrb[0].mxu0
        %v648 = vadd.f32 %v439, %v647
        %v649 = vpop.f32.mrb[0].mxu0
        %v650 = vadd.f32 %v441, %v649
        %651 = vmatprep.mubr.f32.mxu0 0.0
        %652 = vmatmul.mubr.f32.gmra.mrb[0].mxu0 %v516
        %v653 = vpop.f32.mrb[0].mxu0
        %v654 = vadd.f32 %v445, %v653
        %v655 = vpop.f32.mrb[0].mxu0
        %v656 = vadd.f32 %v447, %v655
        %657 = vmatprep.mubr.f32.mxu0 0.0
        %658 = vmatmul.mubr.f32.gmra.mrb[0].mxu0 %v519
        %v659 = vpop.f32.mrb[0].mxu0
        %v660 = vadd.f32 %v451, %v659
        %v661 = vpop.f32.mrb[0].mxu0
        %v662 = vadd.f32 %v453, %v661
        %663 = vmatprep.mubr.f32.mxu0 0.0
        %664 = vmatmul.mubr.f32.gmra.mrb[0].mxu0 %v522
        %v665 = vpop.f32.mrb[0].mxu0
        %v666 = vadd.f32 %v457, %v665
        %v667 = vpop.f32.mrb[0].mxu0
        %v668 = vadd.f32 %v459, %v667
        %669 = vmatprep.mubr.f32.mxu0 0.0
        %670 = vmatmul.mubr.f32.gmra.mrb[0].mxu0 %v525
        %v671 = vpop.f32.mrb[0].mxu0
        %v672 = vadd.f32 %v463, %v671
        %v673 = vpop.f32.mrb[0].mxu0
        %v674 = vadd.f32 %v465, %v673
        %675 = vmatprep.mubr.f32.mxu0 0.0
        %676 = vmatmul.mubr.f32.gmra.mrb[0].mxu0 %v528
        %v677 = vpop.f32.mrb[0].mxu0
        %v678 = vadd.f32 %v469, %v677
        %v679 = vpop.f32.mrb[0].mxu0
        %v680 = vadd.f32 %v471, %v679
        %681 = vmatprep.mubr.f32.mxu0 0.0
        %682 = vmatmul.mubr.f32.gmra.mrb[0].mxu0 %v531
        %v683 = vpop.f32.mrb[0].mxu0
        %v684 = vadd.f32 %v475, %v683
        %v685 = vpop.f32.mrb[0].mxu0
        %v686 = vadd.f32 %v477, %v685
        %687 = vmatprep.mubr.f32.mxu0 0.0
        %688 = vmatmul.mubr.f32.gmra.mrb[0].mxu0 %v534
        %v689 = vpop.f32.mrb[0].mxu0
        %v690 = vadd.f32 %v481, %v689
        %v691 = vpop.f32.mrb[0].mxu0
        %v692 = vadd.f32 %v483, %v691
        %693 = vmatprep.mubr.f32.mxu0 0.0
        %694 = vmatmul.mubr.f32.gmra.mrb[0].mxu0 %v537
        %v695 = vpop.f32.mrb[0].mxu0
        %v696 = vadd.f32 %v487, %v695
        %v697 = vpop.f32.mrb[0].mxu0
        %v698 = vadd.f32 %v489, %v697
        %699 = vdwg.mxu0
        %v700 = vlaneseq
        %v701 = vshrl.u32 %v700, 7
        %v702 = vsub.s32 2, %v701
        %v703 = vrot.slane %v173, %v702
        %v704 = vlaneseq
        %v705 = vshrl.u32 %v704, 7
        %v706 = vsub.s32 6, %v705
        %v707 = vrot.slane %v173, %v706
        %v708 = vlaneseq
        %v709 = vshrl.u32 %v708, 7
        %v710 = vsub.s32 2, %v709
        %v711 = vrot.slane %v703, %v710
        %v712 = vlaneseq
        %v713 = vshrl.u32 %v712, 7
        %v714 = vsub.s32 2, %v713
        %v715 = vrot.slane %v707, %v714
        %vm716 = vcmp.eq.s32.totalorder %v711, %v223
        %vm717 = vcmp.eq.s32.totalorder %v715, %v223
        %vm718 = vcmp.eq.s32.totalorder %v711, %v224
        %vm719 = vcmp.eq.s32.totalorder %v715, %v224
        %v720 = vsel %vm716, 1, 0
        %v721 = vsel %vm717, 1, 0
        %v722 = vsel %vm718, 1, 0
        %v723 = vsel %vm719, 1, 0
        %v724 = vcvt.s32.f32 %v720
        %v725 = vcvt.s32.f32 %v721
        %v726 = vcvt.s32.f32 %v722
        %v727 = vcvt.s32.f32 %v723
        %v729 = vsel %vm281, %v206, 0
        %v732 = vsel %vm281, %v207, 0
        %v735 = vsel %vm281, %v208, 0
        %v738 = vsel %vm281, %v209, 0
        %v741 = vsel %vm281, %v210, 0
        %v744 = vsel %vm281, %v211, 0
        %v747 = vsel %vm281, %v212, 0
        %v750 = vsel %vm281, %v213, 0
        %v753 = vsel %vm281, %v214, 0
        %v756 = vsel %vm281, %v215, 0
        %v759 = vsel %vm281, %v216, 0
        %v762 = vsel %vm281, %v217, 0
        %v765 = vsel %vm281, %v218, 0
        %v768 = vsel %vm281, %v219, 0
        %v771 = vsel %vm281, %v220, 0
        %v774 = vsel %vm281, %v221, 0
        %776 = vmatprep.subr.mxu0 %v725
        %777 = vmatpush1.msra.mxu0 %v724
        %778 = vmatprep.subr.mxu0 %v727
        %779 = vmatpush1.msra.mxu0 %v726
        %780 = vmatprep.subr.mxu0 0.0
        %781 = vmatpush1.msra.mxu0 0.0
        %782 = vmatprep.subr.mxu0 0.0
        %783 = vmatpush1.msra.mxu0 0.0
        %784 = vmatprep.subr.mxu0 0.0
        %785 = vmatpush1.msra.mxu0 0.0
        %786 = vmatprep.subr.mxu0 0.0
        %787 = vmatpush1.msra.mxu0 0.0
        %788 = vmatprep.subr.mxu0 0.0
        %789 = vmatpush1.msra.mxu0 0.0
        %790 = vmatprep.subr.mxu0 0.0
        %791 = vmatpush1.msra.mxu0 0.0
        %792 = vmatprep.subr.mxu0 0.0
        %793 = vmatpush1.msra.mxu0 0.0
        %794 = vmatprep.subr.mxu0 0.0
        %795 = vmatpush1.msra.mxu0 0.0
        %796 = vmatprep.subr.mxu0 0.0
        %797 = vmatpush1.msra.mxu0 0.0
        %798 = vmatprep.subr.mxu0 0.0
        %799 = vmatpush1.msra.mxu0 0.0
        %800 = vmatprep.subr.mxu0 0.0
        %801 = vmatpush1.msra.mxu0 0.0
        %802 = vmatprep.subr.mxu0 0.0
        %803 = vmatpush1.msra.mxu0 0.0
        %804 = vmatprep.subr.mxu0 0.0
        %805 = vmatpush1.msra.mxu0 0.0
        %806 = vmatprep.subr.mxu0 0.0
        %807 = vmatpush1.msra.mxu0 0.0
        %808 = vmatprep.subr.mxu0 0.0
        %809 = vmatpush1.msra.mxu0 0.0
        %810 = vmatprep.subr.mxu0 0.0
        %811 = vmatpush1.msra.mxu0 0.0
        %812 = vmatprep.subr.mxu0 0.0
        %813 = vmatpush1.msra.mxu0 0.0
        %814 = vmatprep.subr.mxu0 0.0
        %815 = vmatpush1.msra.mxu0 0.0
        %816 = vmatprep.subr.mxu0 0.0
        %817 = vmatpush1.msra.mxu0 0.0
        %818 = vmatprep.subr.mxu0 0.0
        %819 = vmatpush1.msra.mxu0 0.0
        %820 = vmatprep.subr.mxu0 0.0
        %821 = vmatpush1.msra.mxu0 0.0
        %822 = vmatprep.subr.mxu0 0.0
        %823 = vmatpush1.msra.mxu0 0.0
        %824 = vmatprep.subr.mxu0 0.0
        %825 = vmatpush1.msra.mxu0 0.0
        %826 = vmatprep.subr.mxu0 0.0
        %827 = vmatpush1.msra.mxu0 0.0
        %828 = vmatprep.subr.mxu0 0.0
        %829 = vmatpush1.msra.mxu0 0.0
        %830 = vmatprep.subr.mxu0 0.0
        %831 = vmatpush1.msra.mxu0 0.0
        %832 = vmatprep.subr.mxu0 0.0
        %833 = vmatpush1.msra.mxu0 0.0
        %834 = vmatprep.subr.mxu0 0.0
        %835 = vmatpush1.msra.mxu0 0.0
        %836 = vmatprep.subr.mxu0 0.0
        %837 = vmatpush1.msra.mxu0 0.0
        %838 = vmatprep.subr.mxu0 0.0
        %839 = vmatpush1.msra.mxu0 0.0
        %840 = vmatprep.mubr.f32.mxu0 0.0
        %841 = vmatmul.mubr.f32.gmra.mrb[0].mxu0 %v729
        %v842 = vpop.f32.mrb[0].mxu0
        %v843 = vadd.f32 0.0, %v842
        %v844 = vpop.f32.mrb[0].mxu0
        %v845 = vadd.f32 0.0, %v844
        %846 = vmatprep.mubr.f32.mxu0 0.0
        %847 = vmatmul.mubr.f32.gmra.mrb[0].mxu0 %v732
        %v848 = vpop.f32.mrb[0].mxu0
        %v849 = vadd.f32 0.0, %v848
        %v850 = vpop.f32.mrb[0].mxu0
        %v851 = vadd.f32 0.0, %v850
        %852 = vmatprep.mubr.f32.mxu0 0.0
        %853 = vmatmul.mubr.f32.gmra.mrb[0].mxu0 %v735
        %v854 = vpop.f32.mrb[0].mxu0
        %v855 = vadd.f32 0.0, %v854
        %v856 = vpop.f32.mrb[0].mxu0
        %v857 = vadd.f32 0.0, %v856
        %858 = vmatprep.mubr.f32.mxu0 0.0
        %859 = vmatmul.mubr.f32.gmra.mrb[0].mxu0 %v738
        %v860 = vpop.f32.mrb[0].mxu0
        %v861 = vadd.f32 0.0, %v860
        %v862 = vpop.f32.mrb[0].mxu0
        %v863 = vadd.f32 0.0, %v862
        %864 = vmatprep.mubr.f32.mxu0 0.0
        %865 = vmatmul.mubr.f32.gmra.mrb[0].mxu0 %v741
        %v866 = vpop.f32.mrb[0].mxu0
        %v867 = vadd.f32 0.0, %v866
        %v868 = vpop.f32.mrb[0].mxu0
        %v869 = vadd.f32 0.0, %v868
        %870 = vmatprep.mubr.f32.mxu0 0.0
        %871 = vmatmul.mubr.f32.gmra.mrb[0].mxu0 %v744
        %v872 = vpop.f32.mrb[0].mxu0
        %v873 = vadd.f32 0.0, %v872
        %v874 = vpop.f32.mrb[0].mxu0
        %v875 = vadd.f32 0.0, %v874
        %876 = vmatprep.mubr.f32.mxu0 0.0
        %877 = vmatmul.mubr.f32.gmra.mrb[0].mxu0 %v747
        %v878 = vpop.f32.mrb[0].mxu0
        %v879 = vadd.f32 0.0, %v878
        %v880 = vpop.f32.mrb[0].mxu0
        %v881 = vadd.f32 0.0, %v880
        %882 = vmatprep.mubr.f32.mxu0 0.0
        %883 = vmatmul.mubr.f32.gmra.mrb[0].mxu0 %v750
        %v884 = vpop.f32.mrb[0].mxu0
        %v885 = vadd.f32 0.0, %v884
        %v886 = vpop.f32.mrb[0].mxu0
        %v887 = vadd.f32 0.0, %v886
        %888 = vmatprep.mubr.f32.mxu0 0.0
        %889 = vmatmul.mubr.f32.gmra.mrb[0].mxu0 %v753
        %v890 = vpop.f32.mrb[0].mxu0
        %v891 = vadd.f32 0.0, %v890
        %v892 = vpop.f32.mrb[0].mxu0
        %v893 = vadd.f32 0.0, %v892
        %894 = vmatprep.mubr.f32.mxu0 0.0
        %895 = vmatmul.mubr.f32.gmra.mrb[0].mxu0 %v756
        %v896 = vpop.f32.mrb[0].mxu0
        %v897 = vadd.f32 0.0, %v896
        %v898 = vpop.f32.mrb[0].mxu0
        %v899 = vadd.f32 0.0, %v898
        %900 = vmatprep.mubr.f32.mxu0 0.0
        %901 = vmatmul.mubr.f32.gmra.mrb[0].mxu0 %v759
        %v902 = vpop.f32.mrb[0].mxu0
        %v903 = vadd.f32 0.0, %v902
        %v904 = vpop.f32.mrb[0].mxu0
        %v905 = vadd.f32 0.0, %v904
        %906 = vmatprep.mubr.f32.mxu0 0.0
        %907 = vmatmul.mubr.f32.gmra.mrb[0].mxu0 %v762
        %v908 = vpop.f32.mrb[0].mxu0
        %v909 = vadd.f32 0.0, %v908
        %v910 = vpop.f32.mrb[0].mxu0
        %v911 = vadd.f32 0.0, %v910
        %912 = vmatprep.mubr.f32.mxu0 0.0
        %913 = vmatmul.mubr.f32.gmra.mrb[0].mxu0 %v765
        %v914 = vpop.f32.mrb[0].mxu0
        %v915 = vadd.f32 0.0, %v914
        %v916 = vpop.f32.mrb[0].mxu0
        %v917 = vadd.f32 0.0, %v916
        %918 = vmatprep.mubr.f32.mxu0 0.0
        %919 = vmatmul.mubr.f32.gmra.mrb[0].mxu0 %v768
        %v920 = vpop.f32.mrb[0].mxu0
        %v921 = vadd.f32 0.0, %v920
        %v922 = vpop.f32.mrb[0].mxu0
        %v923 = vadd.f32 0.0, %v922
        %924 = vmatprep.mubr.f32.mxu0 0.0
        %925 = vmatmul.mubr.f32.gmra.mrb[0].mxu0 %v771
        %v926 = vpop.f32.mrb[0].mxu0
        %v927 = vadd.f32 0.0, %v926
        %v928 = vpop.f32.mrb[0].mxu0
        %v929 = vadd.f32 0.0, %v928
        %930 = vmatprep.mubr.f32.mxu0 0.0
        %931 = vmatmul.mubr.f32.gmra.mrb[0].mxu0 %v774
        %v932 = vpop.f32.mrb[0].mxu0
        %v933 = vadd.f32 0.0, %v932
        %v934 = vpop.f32.mrb[0].mxu0
        %v935 = vadd.f32 0.0, %v934
        %936 = vdwg.mxu0
        %v937 = vadd.f32 %v606, %v843
        %v938 = vadd.f32 %v608, %v845
        %v939 = vadd.f32 %v612, %v849
        %v940 = vadd.f32 %v614, %v851
        %v941 = vadd.f32 %v618, %v855
        %v942 = vadd.f32 %v620, %v857
        %v943 = vadd.f32 %v624, %v861
        %v944 = vadd.f32 %v626, %v863
        %v945 = vadd.f32 %v630, %v867
        %v946 = vadd.f32 %v632, %v869
        %v947 = vadd.f32 %v636, %v873
        %v948 = vadd.f32 %v638, %v875
        %v949 = vadd.f32 %v642, %v879
        %v950 = vadd.f32 %v644, %v881
        %v951 = vadd.f32 %v648, %v885
        %v952 = vadd.f32 %v650, %v887
        %v953 = vadd.f32 %v654, %v891
        %v954 = vadd.f32 %v656, %v893
        %v955 = vadd.f32 %v660, %v897
        %v956 = vadd.f32 %v662, %v899
        %v957 = vadd.f32 %v666, %v903
        %v958 = vadd.f32 %v668, %v905
        %v959 = vadd.f32 %v672, %v909
        %v960 = vadd.f32 %v674, %v911
        %v961 = vadd.f32 %v678, %v915
        %v962 = vadd.f32 %v680, %v917
        %v963 = vadd.f32 %v684, %v921
        %v964 = vadd.f32 %v686, %v923
        %v965 = vadd.f32 %v690, %v927
        %v966 = vadd.f32 %v692, %v929
        %v967 = vadd.f32 %v696, %v933
        %v968 = vadd.f32 %v698, %v935
        %969 = vst [vmem:[%s161] sm:$0xff] %v937
        %970 = vst [vmem:[%s161 + $0x8] sm:$0xff] %v938
        %971 = vst [vmem:[%s161 + $0x10] sm:$0xff] %v939
        %972 = vst [vmem:[%s161 + $0x18] sm:$0xff] %v940
        %973 = vst [vmem:[%s161 + $0x20] sm:$0xff] %v941
        %974 = vst [vmem:[%s161 + $0x28] sm:$0xff] %v942
        %975 = vst [vmem:[%s161 + $0x30] sm:$0xff] %v943
        %976 = vst [vmem:[%s161 + $0x38] sm:$0xff] %v944
        %977 = vst [vmem:[%s161 + $0x40] sm:$0xff] %v945
        %978 = vst [vmem:[%s161 + $0x48] sm:$0xff] %v946
        %979 = vst [vmem:[%s161 + $0x50] sm:$0xff] %v947
        %980 = vst [vmem:[%s161 + $0x58] sm:$0xff] %v948
        %981 = vst [vmem:[%s161 + $0x60] sm:$0xff] %v949
        %982 = vst [vmem:[%s161 + $0x68] sm:$0xff] %v950
        %983 = vst [vmem:[%s161 + $0x70] sm:$0xff] %v951
        %984 = vst [vmem:[%s161 + $0x78] sm:$0xff] %v952
        %985 = vst [vmem:[%s161 + $0x80] sm:$0xff] %v953
        %986 = vst [vmem:[%s161 + $0x88] sm:$0xff] %v954
        %987 = vst [vmem:[%s161 + $0x90] sm:$0xff] %v955
        %988 = vst [vmem:[%s161 + $0x98] sm:$0xff] %v956
        %989 = vst [vmem:[%s161 + $0xa0] sm:$0xff] %v957
        %990 = vst [vmem:[%s161 + $0xa8] sm:$0xff] %v958
        %991 = vst [vmem:[%s161 + $0xb0] sm:$0xff] %v959
        %992 = vst [vmem:[%s161 + $0xb8] sm:$0xff] %v960
        %993 = vst [vmem:[%s161 + $0xc0] sm:$0xff] %v961
        %994 = vst [vmem:[%s161 + $0xc8] sm:$0xff] %v962
        %995 = vst [vmem:[%s161 + $0xd0] sm:$0xff] %v963
        %996 = vst [vmem:[%s161 + $0xd8] sm:$0xff] %v964
        %997 = vst [vmem:[%s161 + $0xe0] sm:$0xff] %v965
        %998 = vst [vmem:[%s161 + $0xe8] sm:$0xff] %v966
        %999 = vst [vmem:[%s161 + $0xf0] sm:$0xff] %v967
        %1000 = vst [vmem:[%s161 + $0xf8] sm:$0xff] %v968
        %s1001 = sand.u32 %s87, 1
        %s1002 = scalar_lea.sflag [#allocation3], %s1001
        %s1003 = sand.u32 %s87, 1
        %s1004 = smul.addr %s1003, 256
        %s1005 = scalar_lea.vmem [#allocation2], %s1004
        // Predicated region
        $region29: #{tpu_custom_call.1} parent=27 // pred_check
          %p1006 = pneg %p97
        $region30: #{tpu_custom_call.1} parent=27 // pred_check_branch
          %1008 = sbr.rel (%p1006) target = $region32
        $region31: #{tpu_custom_call.1} parent=27 // pred_region
          %s1009 = smul.u32 2, %s21
          %s1011 = ssub.s32 4096, 4096
          %1012 = vsyncadd %s1002, %s1011
          %s1013 = smul.addr %s20, 32
          %s1014 = sadd.s32 %s1009, %s1013
          %s1015 = smul.addr %s1014, 128
          %s1016 = scalar_lea.hbm %s2, %s1015
          %s1017 = sshll.u32 %s1005, 4
          %s1018 = int_to_ptr.vmem [resolvable:$true] %s1017
          %1023 = dma.vmem_to_hbm [thread:$0]  %s1018, 4096, %s1016, %s1002, 256, 256, 16
        $region32: #{tpu_custom_call.1} parent=27 // pred_fallthru
          _
      $region28: #{tpu_custom_call.1} parent=5 // pred_fallthru
        _
      %p1024 = scmp.le.s32.totalorder 2, %s11
      // Predicated region
      $region33: #{tpu_custom_call.1} parent=5 // pred_check
        %p1025 = pneg %p1024
      $region34: #{tpu_custom_call.1} parent=5 // pred_check_branch
        %1027 = sbr.rel (%p1025) target = $region36
      $region35: #{tpu_custom_call.1} parent=5 // pred_region
        %s1028 = ssub.s32 %s11, 2
        // Predicated region
        $region37: #{tpu_custom_call.1} parent=35 // pred_check
          %p1029 = pneg %p103
        $region38: #{tpu_custom_call.1} parent=35 // pred_check_branch
          %1031 = sbr.rel (%p1029) target = $region40
        $region39: #{tpu_custom_call.1} parent=35 // pred_region
          %s1032 = sand.u32 %s88, 1
          %s1033 = scalar_lea.sflag [#allocation3], %s1032
          %s1034 = sand.u32 %s88, 1
          %s1035 = smul.addr %s1034, 256
          %s1036 = scalar_lea.vmem [#allocation2], %s1035
          %1037 = dma.done %s1033, 4096
        $region40: #{tpu_custom_call.1} parent=35 // pred_fallthru
          _
      $region36: #{tpu_custom_call.1} parent=5 // pred_fallthru
        _
    $region6: #{tpu_custom_call.1} parent=1 // loop_footer
      %s15 = sadd.s32 1, %s11
    $region7: #{tpu_custom_call.1} parent=1 // loop_footer_branch
      %10 = sbr.rel target = $region3
    $region8: #{tpu_custom_call.1} parent=1 // loop_exit
      _
    %1038 = vsyncpa [#allocation3], 1
    %s1039 = scalar_lea.sflag [#allocation3], 1
    %1040 = vsyncpa %s1039, 1

</llo_original>
